<compile_context>
chip_gen: v5e
topology: v5e:2x2
jax: 0.10.0
libtpu: 0.0.40
codegen_flags: <defaults>
</compile_context>

<pallas_src>
import functools

import jax
import jax.numpy as jnp
from jax.experimental import pallas as pl
from jax.experimental.pallas import tpu as pltpu


def _round_up(n: int, m: int) -> int:
    return ((n + m - 1) // m) * m


# -----------------------------------------------------------------------------
# Kernel: fully fused 3-layer MLP on one batch tile.  Weights/biases are VMEM
# resident (constant index_map, single-buffered); only x / out tiles stream.
# -----------------------------------------------------------------------------
def _mlp_kernel(x_ref, w1_ref, b1_ref, w2_ref, b2_ref, w3_ref, b3_ref, o_ref):
    x = x_ref[...].astype(jnp.bfloat16)                       # f32 -> bf16 in-kernel
    # layer 1 + ReLU (bf16 matmul, f32 accumulate / epilogue)
    h1 = jnp.dot(x, w1_ref[...], preferred_element_type=jnp.float32)
    h1 = jnp.maximum(h1 + b1_ref[...], 0.0)
    # layer 2 + ReLU
    h2 = jnp.dot(h1.astype(jnp.bfloat16), w2_ref[...],
                 preferred_element_type=jnp.float32)
    h2 = jnp.maximum(h2 + b2_ref[...], 0.0)
    # layer 3 (no activation)
    out = jnp.dot(h2.astype(jnp.bfloat16), w3_ref[...],
                  preferred_element_type=jnp.float32)
    o_ref[...] = (out + b3_ref[...]).astype(o_ref.dtype)


# -----------------------------------------------------------------------------
# One-time parameter preparation (hoisted out of the forward):
#   weights stored [in, out], feature dims padded to 128, weights bf16, biases f32.
# -----------------------------------------------------------------------------
def prepare_params(w1, b1, w2, b2, w3, b3):
    in_size, hid_size = w1.shape
    out_size = w3.shape[1]
    HID_P = _round_up(hid_size, 128)
    OUT_P = _round_up(out_size, 128)

    def pad2(a, rows, cols, dtype):
        a = a.astype(dtype)
        return jnp.pad(a, ((0, rows - a.shape[0]), (0, cols - a.shape[1])))

    prepared = (
        pad2(w1, in_size, HID_P, jnp.bfloat16),   # K left unpadded (kernel handles sub-128 K)
        pad2(b1, 1, HID_P, jnp.float32),
        pad2(w2, HID_P, HID_P, jnp.bfloat16),
        pad2(b2, 1, HID_P, jnp.float32),
        pad2(w3, HID_P, OUT_P, jnp.bfloat16),
        pad2(b3, 1, OUT_P, jnp.float32),
    )
    return jax.block_until_ready(jax.tree_util.tree_map(jnp.asarray, prepared))


# -----------------------------------------------------------------------------
# Forward.  Only activation padding (batch rows) happens per call.
# -----------------------------------------------------------------------------
@functools.partial(jax.jit, static_argnames=("out_size",))
def neural_net_forward(x, w1_p, b1_p, w2_p, b2_p, w3_p, b3_p, *, out_size):
    """x: [B, input_size] float; prepared params from prepare_params(). Returns f32 [B, out_size]."""
    B, in_size = x.shape
    HID_P = w1_p.shape[1]
    OUT_P = w3_p.shape[1]
    f32 = jnp.float32

    # ---- batch tiling: big tiles for the 256-wide MXU, >=2 grid steps for v7x dual-TC ----
    B8 = _round_up(B, 8)
    if B8 >= 512:
        TB = 256
    elif B8 >= 256:
        TB = 128
    else:
        TB = max(8, _round_up((B8 + 1) // 2, 8))   # split small batches in two
    B_P = _round_up(B8, TB)
    if B_P // TB < 2:
        B_P = 2 * TB                               # guarantee 2 grid steps (v7x: both cores)
    n_tiles = B_P // TB

    x_p = x.astype(f32)
    if B_P != B:
        x_p = jnp.pad(x_p, ((0, B_P - B), (0, 0)))

    # ---- VMEM budget (weights single-buffered, activations double-buffered) ----
    resident_bytes = (
        2 * (in_size * HID_P + HID_P * HID_P + HID_P * OUT_P)   # bf16 weights
        + 4 * (2 * HID_P + OUT_P)                               # f32 biases
        + 2 * 4 * TB * in_size                                  # f32 x tiles (x2 buffers)
        + 2 * 4 * TB * OUT_P                                    # f32 out tiles (x2 buffers)
        + 4 * 4 * TB * HID_P                                    # h1/h2 f32 temporaries + margin
    )
    vmem_limit = int(min(resident_bytes + (4 << 20), 64 << 20))
    # TODO(synk): for HID_P large enough that the resident weights exceed ~48 MiB
    # (v7x's 64 MiB VMEM), add a hidden-dim grid axis with an f32 acc scratch instead
    # of keeping all three weights resident.

    # weights/biases: constant block index -> DMA'd once, single-buffered, VMEM resident.
    def resident(shape):
        return pl.BlockSpec(shape, lambda i: (0, 0), pipeline_mode=pl.Buffered(1))

    out_padded = pl.pallas_call(
        _mlp_kernel,
        out_shape=jax.ShapeDtypeStruct((B_P, OUT_P), f32),
        grid=(n_tiles,),
        in_specs=[
            pl.BlockSpec((TB, in_size), lambda i: (i, 0)),   # x tile per grid step (f32, unpadded K)
            resident((in_size, HID_P)),
            resident((1, HID_P)),
            resident((HID_P, HID_P)),
            resident((1, HID_P)),
            resident((HID_P, OUT_P)),
            resident((1, OUT_P)),
        ],
        out_specs=pl.BlockSpec((TB, OUT_P), lambda i: (i, 0)),
        compiler_params=pltpu.CompilerParams(
            dimension_semantics=("parallel",),
            vmem_limit_bytes=vmem_limit,
        ),
    )(x_p, w1_p, b1_p, w2_p, b2_p, w3_p, b3_p)

    if B_P == B and OUT_P == out_size:
        return out_padded                          # no slice copy needed
    return out_padded[:B, :out_size]


# -----------------------------------------------------------------------------
# Torch-like init (nn.Linear: uniform(-1/sqrt(fan_in), 1/sqrt(fan_in))), stored [in, out].
# -----------------------------------------------------------------------------
def init_params(key, input_size, hidden_size, output_size):
    ks = jax.random.split(key, 6)

    def linear(kw, kb, fan_in, fan_out):
        bound = 1.0 / jnp.sqrt(fan_in)
        w = jax.random.uniform(kw, (fan_in, fan_out), jnp.float32, -bound, bound)
        b = jax.random.uniform(kb, (1, fan_out), jnp.float32, -bound, bound)
        return w, b

    w1, b1 = linear(ks[0], ks[1], input_size, hidden_size)
    w2, b2 = linear(ks[2], ks[3], hidden_size, hidden_size)
    w3, b3 = linear(ks[4], ks[5], hidden_size, output_size)
    return w1, b1, w2, b2, w3, b3


if __name__ == "__main__":
    # shapes implied by the module's config dict: input_size, hidden_size, output_size
    batch, input_size, hidden_size, output_size = 8, 32, 32, 16

    key = jax.random.PRNGKey(0)
    kx, kp = jax.random.split(key)
    x = jax.random.normal(kx, (batch, input_size), jnp.float32)
    raw_params = init_params(kp, input_size, hidden_size, output_size)

    # one-time prep (padded / transposed / bf16) -- NOT part of the per-call forward
    prepped = prepare_params(*raw_params)

    out = neural_net_forward(x, *prepped, out_size=output_size)
    out = jax.block_until_ready(out)
    assert out.shape == (batch, output_size)

    # Reference with the same bf16-matmul / f32-accumulate semantics (plain JAX).
    w1, b1, w2, b2, w3, b3 = raw_params
    bf16, f32 = jnp.bfloat16, jnp.float32
    r = jnp.dot(x.astype(bf16), w1.astype(bf16), preferred_element_type=f32) + b1
    r = jnp.maximum(r, 0.0)
    r = jnp.dot(r.astype(bf16), w2.astype(bf16), preferred_element_type=f32) + b2
    r = jnp.maximum(r, 0.0)
    ref_bf16 = jnp.dot(r.astype(bf16), w3.astype(bf16), preferred_element_type=f32) + b3
    assert jnp.allclose(out, ref_bf16, atol=1e-4, rtol=1e-4), "mismatch vs bf16 reference"

    # Loose check against the full-f32 PyTorch-equivalent forward (bf16 quantization only).
    ref_f32 = jnp.maximum(x @ w1 + b1, 0.0)
    ref_f32 = jnp.maximum(ref_f32 @ w2 + b2, 0.0)
    ref_f32 = ref_f32 @ w3 + b3
    assert jnp.allclose(out, ref_f32, atol=5e-2, rtol=5e-2), "mismatch vs f32 reference"

    print("KERNEL_OK")
</pallas_src>

<mosaic_0001>
module attributes {stable_mosaic.version = 11 : i64} {
  func.func @_mlp_kernel(%arg0: i32, %arg1: memref<8x32xf32, #tpu.memory_space<vmem>>, %arg2: memref<32x128xbf16, #tpu.memory_space<vmem>>, %arg3: memref<1x128xf32, #tpu.memory_space<vmem>>, %arg4: memref<128x128xbf16, #tpu.memory_space<vmem>>, %arg5: memref<1x128xf32, #tpu.memory_space<vmem>>, %arg6: memref<128x128xbf16, #tpu.memory_space<vmem>>, %arg7: memref<1x128xf32, #tpu.memory_space<vmem>>, %arg8: memref<8x128xf32, #tpu.memory_space<vmem>>) attributes {dimension_semantics = [#tpu.dimension_semantics<parallel>], iteration_bounds = array<i64: 2>, scalar_prefetch = 0 : i64, scratch_operands = 0 : i64, tpu.core_type = #tpu.core_type<tc>, window_params = [{transform_indices = @transform_0, window_bounds = array<i64: 8, 32>}, {pipeline_mode = #tpu.pipeline_mode<synchronous>, transform_indices = @transform_1, window_bounds = array<i64: 32, 128>}, {pipeline_mode = #tpu.pipeline_mode<synchronous>, transform_indices = @transform_2, window_bounds = array<i64: 1, 128>}, {pipeline_mode = #tpu.pipeline_mode<synchronous>, transform_indices = @transform_3, window_bounds = array<i64: 128, 128>}, {pipeline_mode = #tpu.pipeline_mode<synchronous>, transform_indices = @transform_4, window_bounds = array<i64: 1, 128>}, {pipeline_mode = #tpu.pipeline_mode<synchronous>, transform_indices = @transform_5, window_bounds = array<i64: 128, 128>}, {pipeline_mode = #tpu.pipeline_mode<synchronous>, transform_indices = @transform_6, window_bounds = array<i64: 1, 128>}, {transform_indices = @transform_7, window_bounds = array<i64: 8, 128>}]} {
    %c0 = arith.constant 0 : index
    %c0_0 = arith.constant 0 : index
    %0 = vector.load %arg1[%c0, %c0_0] : memref<8x32xf32, #tpu.memory_space<vmem>>, vector<8x32xf32>
    %1 = arith.truncf %0 : vector<8x32xf32> to vector<8x32xbf16>
    %c0_1 = arith.constant 0 : index
    %c0_2 = arith.constant 0 : index
    %2 = vector.load %arg2[%c0_1, %c0_2] : memref<32x128xbf16, #tpu.memory_space<vmem>>, vector<32x128xbf16>
    %cst = arith.constant dense<0.000000e+00> : vector<8x128xf32>
    %3 = tpu.matmul %1, %2, %cst {dimension_numbers = #tpu.dot_dimension_numbers<[1], [0], [0], [1], [0, 0, 1, 1], [], []>} : vector<8x32xbf16>, vector<32x128xbf16>, vector<8x128xf32> -> vector<8x128xf32>
    %c0_3 = arith.constant 0 : index
    %c0_4 = arith.constant 0 : index
    %4 = vector.load %arg3[%c0_3, %c0_4] : memref<1x128xf32, #tpu.memory_space<vmem>>, vector<1x128xf32>
    %5 = vector.broadcast %4 : vector<1x128xf32> to vector<8x128xf32>
    %6 = arith.addf %3, %5 : vector<8x128xf32>
    %cst_5 = arith.constant 0.000000e+00 : f32
    %7 = vector.broadcast %cst_5 : f32 to vector<8x128xf32>
    %8 = arith.maximumf %6, %7 : vector<8x128xf32>
    %9 = arith.truncf %8 : vector<8x128xf32> to vector<8x128xbf16>
    %c0_6 = arith.constant 0 : index
    %c0_7 = arith.constant 0 : index
    %10 = vector.load %arg4[%c0_6, %c0_7] : memref<128x128xbf16, #tpu.memory_space<vmem>>, vector<128x128xbf16>
    %cst_8 = arith.constant dense<0.000000e+00> : vector<8x128xf32>
    %11 = tpu.matmul %9, %10, %cst_8 {dimension_numbers = #tpu.dot_dimension_numbers<[1], [0], [0], [1], [0, 0, 1, 1], [], []>} : vector<8x128xbf16>, vector<128x128xbf16>, vector<8x128xf32> -> vector<8x128xf32>
    %c0_9 = arith.constant 0 : index
    %c0_10 = arith.constant 0 : index
    %12 = vector.load %arg5[%c0_9, %c0_10] : memref<1x128xf32, #tpu.memory_space<vmem>>, vector<1x128xf32>
    %13 = vector.broadcast %12 : vector<1x128xf32> to vector<8x128xf32>
    %14 = arith.addf %11, %13 : vector<8x128xf32>
    %cst_11 = arith.constant 0.000000e+00 : f32
    %15 = vector.broadcast %cst_11 : f32 to vector<8x128xf32>
    %16 = arith.maximumf %14, %15 : vector<8x128xf32>
    %17 = arith.truncf %16 : vector<8x128xf32> to vector<8x128xbf16>
    %c0_12 = arith.constant 0 : index
    %c0_13 = arith.constant 0 : index
    %18 = vector.load %arg6[%c0_12, %c0_13] : memref<128x128xbf16, #tpu.memory_space<vmem>>, vector<128x128xbf16>
    %cst_14 = arith.constant dense<0.000000e+00> : vector<8x128xf32>
    %19 = tpu.matmul %17, %18, %cst_14 {dimension_numbers = #tpu.dot_dimension_numbers<[1], [0], [0], [1], [0, 0, 1, 1], [], []>} : vector<8x128xbf16>, vector<128x128xbf16>, vector<8x128xf32> -> vector<8x128xf32>
    %c0_15 = arith.constant 0 : index
    %c0_16 = arith.constant 0 : index
    %20 = vector.load %arg7[%c0_15, %c0_16] : memref<1x128xf32, #tpu.memory_space<vmem>>, vector<1x128xf32>
    %21 = vector.broadcast %20 : vector<1x128xf32> to vector<8x128xf32>
    %22 = arith.addf %19, %21 : vector<8x128xf32>
    %c0_17 = arith.constant 0 : index
    %c0_18 = arith.constant 0 : index
    %23 = vector.load %arg8[%c0_17, %c0_18] : memref<8x128xf32, #tpu.memory_space<vmem>>, vector<8x128xf32>
    tpu.vector_store %arg8[%c0_17, %c0_18], %22 {strides = array<i32>} : memref<8x128xf32, #tpu.memory_space<vmem>>, vector<8x128xf32>,
    return
  }
  func.func @transform_0(%arg0: i32) -> (i32, i32) {
    %c0_i32 = arith.constant 0 : i32
    %c0_i32_0 = arith.constant 0 : i32
    return %arg0, %c0_i32 : i32, i32
  }
  func.func @transform_1(%arg0: i32) -> (i32, i32) {
    %c0_i32 = arith.constant 0 : i32
    %c0_i32_0 = arith.constant 0 : i32
    %c0_i32_1 = arith.constant 0 : i32
    return %c0_i32, %c0_i32_0 : i32, i32
  }
  func.func @transform_2(%arg0: i32) -> (i32, i32) {
    %c0_i32 = arith.constant 0 : i32
    %c0_i32_0 = arith.constant 0 : i32
    %c0_i32_1 = arith.constant 0 : i32
    return %c0_i32, %c0_i32_0 : i32, i32
  }
  func.func @transform_3(%arg0: i32) -> (i32, i32) {
    %c0_i32 = arith.constant 0 : i32
    %c0_i32_0 = arith.constant 0 : i32
    %c0_i32_1 = arith.constant 0 : i32
    return %c0_i32, %c0_i32_0 : i32, i32
  }
  func.func @transform_4(%arg0: i32) -> (i32, i32) {
    %c0_i32 = arith.constant 0 : i32
    %c0_i32_0 = arith.constant 0 : i32
    %c0_i32_1 = arith.constant 0 : i32
    return %c0_i32, %c0_i32_0 : i32, i32
  }
  func.func @transform_5(%arg0: i32) -> (i32, i32) {
    %c0_i32 = arith.constant 0 : i32
    %c0_i32_0 = arith.constant 0 : i32
    %c0_i32_1 = arith.constant 0 : i32
    return %c0_i32, %c0_i32_0 : i32, i32
  }
  func.func @transform_6(%arg0: i32) -> (i32, i32) {
    %c0_i32 = arith.constant 0 : i32
    %c0_i32_0 = arith.constant 0 : i32
    %c0_i32_1 = arith.constant 0 : i32
    return %c0_i32, %c0_i32_0 : i32, i32
  }
  func.func @transform_7(%arg0: i32) -> (i32, i32) {
    %c0_i32 = arith.constant 0 : i32
    %c0_i32_0 = arith.constant 0 : i32
    return %arg0, %c0_i32 : i32, i32
  }
}

</mosaic_0001>

<llo_original>
// kernel: neural_net_forward.1
$region0: #{neural_net_forward.1}
  #allocation0 [shape = 'u32[]', space=smem, size = 0x4, offset = 0x4, fixed_abs, tag = 'smem constant byte address 0x4 - core index']
  #allocation1 [shape = 'u32[72,128]{1,0:T(1,128)}', space=vmem, size = 0x9000, scoped, tag = 'internal scratch']
  %s0 = inlined_call_operand.vmem [shape: f32[16,32], index: 0, kind: input, shape index: {}]
  %s1 = inlined_call_operand.vmem [shape: bf16[32,128], index: 1, kind: input, shape index: {}]
  %s2 = inlined_call_operand.vmem [shape: f32[1,128], index: 2, kind: input, shape index: {}]
  %s3 = inlined_call_operand.hbm [shape: bf16[128,128], index: 3, kind: input, shape index: {}]
  %s4 = inlined_call_operand.vmem [shape: f32[1,128], index: 4, kind: input, shape index: {}]
  %s5 = inlined_call_operand.hbm [shape: bf16[128,128], index: 5, kind: input, shape index: {}]
  %s6 = inlined_call_operand.vmem [shape: f32[1,128], index: 6, kind: input, shape index: {}]
  %s7 = inlined_call_operand.vmem [shape: f32[16,128], index: 7, kind: output, shape index: {}]
  %s8 = sld [smem:[#allocation0]]
  $region69: #{neural_net_forward.1} parent=0
    _
  %s10 = ssub.s32 1, %s8
  %s11 = scalar_select 0, %s10, %s8
  $region1: #{neural_net_forward.1} parent=0
    #allocation2 [shape = 'u8[32768]{0}', space=vmem, size = 0x8000, scoped, tag = 'input window, operand 3, single buffered']
    #allocation3 [shape = 's32[2]{0}', space=sflag, size = 0x8, scoped, tag = 'scoped memory for neural_net_forward.1']
    #allocation4 [shape = 'u8[32768]{0}', space=vmem, size = 0x8000, scoped, tag = 'input window, operand 5, single buffered']
    #allocation5 [shape = 's32[1]{0}', space=sflag, size = 0x4, scoped, tag = 'scoped memory for neural_net_forward.1']
    %12 = vsyncpa [#allocation3], 0
    %13 = vsyncpa [#allocation5], 0
    loop: start=0, step=1, limit=4
    $region2: #{neural_net_forward.1} parent=1 // loop_pre_header
      _
    $region3: #{neural_net_forward.1} parent=1 // loop_header
      %s15 = sphi 0, %s19
      %p16 = scmp.ge.s32.totalorder %s15, 4
      %s25 = sphi 0, %s27
      %s28 = sphi 0, %s25
      %s29 = sphi 0, %s28
      %s45 = sphi 0, %s29
      %s49 = sphi 0, %s49
      %s51 = sphi 0, %s49
      %s52 = sphi 0, %s51
      %s66 = sphi 0, %s52
      %s70 = sphi 0, %s70
      %s72 = sphi 0, %s70
      %s73 = sphi 0, %s72
      %s87 = sphi 0, %s73
      %s91 = sphi 0, %s91
      %s93 = sphi 0, %s91
      %s94 = sphi 0, %s93
      %s108 = sphi 0, %s94
      %s112 = sphi 0, %s112
      %s114 = sphi 0, %s112
      %s115 = sphi 0, %s114
      %s129 = sphi 0, %s115
      %s133 = sphi 0, %s133
      %s135 = sphi 0, %s133
      %s136 = sphi 0, %s135
      %s150 = sphi 0, %s136
      %s154 = sphi 0, %s154
      %s156 = sphi 0, %s154
      %s157 = sphi 0, %s156
      %s171 = sphi 0, %s157
      %s177 = sphi 0, %s179
      %s180 = sphi 0, %s177
      %s181 = sphi 0, %s180
      %s197 = sphi 0, %s181
    $region4: #{neural_net_forward.1} parent=1 // loop_header_branch
      %18 = sbr.rel (%p16) target = $region8
    $region5: #{neural_net_forward.1} parent=1 // loop_body
      %s20 = ssub.s32 %s15, 1
      %s21 = ssub.s32 %s15, 2
      %s22 = sadd.s32 %s15, 1
      %s23 = ssub.s32 %s15, %s22
      %p24 = scmp.eq.s32.totalorder %s23, 0
      %s26 = sadd.s32 %s25, 1
      %s27 = scalar_select %p24, %s25, %s26
      %p30 = pneg %p24
      %p31 = scmp.eq.s32.totalorder %s15, 1
      %p32 = por %p30, %p31
      %p33 = scmp.ne.s32.totalorder %s25, %s28
      %p34 = scmp.eq.s32.totalorder %s15, 0
      %p35 = por %p33, %p34
      %p36 = scmp.ne.s32.totalorder %s25, %s28
      %p37 = scmp.eq.s32.totalorder %s20, 1
      %p38 = por %p36, %p37
      %p39 = scmp.ne.s32.totalorder %s28, %s29
      %p40 = scmp.eq.s32.totalorder %s20, 0
      %p41 = por %p39, %p40
      %p42 = scmp.ne.s32.totalorder %s28, %s29
      %p43 = scmp.eq.s32.totalorder %s21, 1
      %p44 = por %p42, %p43
      %p46 = scmp.ne.s32.totalorder %s29, %s45
      %p47 = scmp.eq.s32.totalorder %s21, 0
      %p48 = por %p46, %p47
      %s50 = sadd.s32 %s49, 1
      %p53 = scmp.eq.s32.totalorder %s15, 1
      %p54 = scmp.ne.s32.totalorder %s49, %s51
      %p55 = scmp.eq.s32.totalorder %s15, 0
      %p56 = por %p54, %p55
      %p57 = scmp.ne.s32.totalorder %s49, %s51
      %p58 = scmp.eq.s32.totalorder %s20, 1
      %p59 = por %p57, %p58
      %p60 = scmp.ne.s32.totalorder %s51, %s52
      %p61 = scmp.eq.s32.totalorder %s20, 0
      %p62 = por %p60, %p61
      %p63 = scmp.ne.s32.totalorder %s51, %s52
      %p64 = scmp.eq.s32.totalorder %s21, 1
      %p65 = por %p63, %p64
      %p67 = scmp.ne.s32.totalorder %s52, %s66
      %p68 = scmp.eq.s32.totalorder %s21, 0
      %p69 = por %p67, %p68
      %s71 = sadd.s32 %s70, 1
      %p74 = scmp.eq.s32.totalorder %s15, 1
      %p75 = scmp.ne.s32.totalorder %s70, %s72
      %p76 = scmp.eq.s32.totalorder %s15, 0
      %p77 = por %p75, %p76
      %p78 = scmp.ne.s32.totalorder %s70, %s72
      %p79 = scmp.eq.s32.totalorder %s20, 1
      %p80 = por %p78, %p79
      %p81 = scmp.ne.s32.totalorder %s72, %s73
      %p82 = scmp.eq.s32.totalorder %s20, 0
      %p83 = por %p81, %p82
      %p84 = scmp.ne.s32.totalorder %s72, %s73
      %p85 = scmp.eq.s32.totalorder %s21, 1
      %p86 = por %p84, %p85
      %p88 = scmp.ne.s32.totalorder %s73, %s87
      %p89 = scmp.eq.s32.totalorder %s21, 0
      %p90 = por %p88, %p89
      %s92 = sadd.s32 %s91, 1
      %p95 = scmp.eq.s32.totalorder %s15, 1
      %p96 = scmp.ne.s32.totalorder %s91, %s93
      %p97 = scmp.eq.s32.totalorder %s15, 0
      %p98 = por %p96, %p97
      %p99 = scmp.ne.s32.totalorder %s91, %s93
      %p100 = scmp.eq.s32.totalorder %s20, 1
      %p101 = por %p99, %p100
      %p102 = scmp.ne.s32.totalorder %s93, %s94
      %p103 = scmp.eq.s32.totalorder %s20, 0
      %p104 = por %p102, %p103
      %p105 = scmp.ne.s32.totalorder %s93, %s94
      %p106 = scmp.eq.s32.totalorder %s21, 1
      %p107 = por %p105, %p106
      %p109 = scmp.ne.s32.totalorder %s94, %s108
      %p110 = scmp.eq.s32.totalorder %s21, 0
      %p111 = por %p109, %p110
      %s113 = sadd.s32 %s112, 1
      %p116 = scmp.eq.s32.totalorder %s15, 1
      %p117 = scmp.ne.s32.totalorder %s112, %s114
      %p118 = scmp.eq.s32.totalorder %s15, 0
      %p119 = por %p117, %p118
      %p120 = scmp.ne.s32.totalorder %s112, %s114
      %p121 = scmp.eq.s32.totalorder %s20, 1
      %p122 = por %p120, %p121
      %p123 = scmp.ne.s32.totalorder %s114, %s115
      %p124 = scmp.eq.s32.totalorder %s20, 0
      %p125 = por %p123, %p124
      %p126 = scmp.ne.s32.totalorder %s114, %s115
      %p127 = scmp.eq.s32.totalorder %s21, 1
      %p128 = por %p126, %p127
      %p130 = scmp.ne.s32.totalorder %s115, %s129
      %p131 = scmp.eq.s32.totalorder %s21, 0
      %p132 = por %p130, %p131
      %s134 = sadd.s32 %s133, 1
      %p137 = scmp.eq.s32.totalorder %s15, 1
      %p138 = scmp.ne.s32.totalorder %s133, %s135
      %p139 = scmp.eq.s32.totalorder %s15, 0
      %p140 = por %p138, %p139
      %p141 = scmp.ne.s32.totalorder %s133, %s135
      %p142 = scmp.eq.s32.totalorder %s20, 1
      %p143 = por %p141, %p142
      %p144 = scmp.ne.s32.totalorder %s135, %s136
      %p145 = scmp.eq.s32.totalorder %s20, 0
      %p146 = por %p144, %p145
      %p147 = scmp.ne.s32.totalorder %s135, %s136
      %p148 = scmp.eq.s32.totalorder %s21, 1
      %p149 = por %p147, %p148
      %p151 = scmp.ne.s32.totalorder %s136, %s150
      %p152 = scmp.eq.s32.totalorder %s21, 0
      %p153 = por %p151, %p152
      %s155 = sadd.s32 %s154, 1
      %p158 = scmp.eq.s32.totalorder %s15, 1
      %p159 = scmp.ne.s32.totalorder %s154, %s156
      %p160 = scmp.eq.s32.totalorder %s15, 0
      %p161 = por %p159, %p160
      %p162 = scmp.ne.s32.totalorder %s154, %s156
      %p163 = scmp.eq.s32.totalorder %s20, 1
      %p164 = por %p162, %p163
      %p165 = scmp.ne.s32.totalorder %s156, %s157
      %p166 = scmp.eq.s32.totalorder %s20, 0
      %p167 = por %p165, %p166
      %p168 = scmp.ne.s32.totalorder %s156, %s157
      %p169 = scmp.eq.s32.totalorder %s21, 1
      %p170 = por %p168, %p169
      %p172 = scmp.ne.s32.totalorder %s157, %s171
      %p173 = scmp.eq.s32.totalorder %s21, 0
      %p174 = por %p172, %p173
      %s175 = ssub.s32 %s15, %s22
      %p176 = scmp.eq.s32.totalorder %s175, 0
      %s178 = sadd.s32 %s177, 1
      %s179 = scalar_select %p176, %s177, %s178
      %p182 = pneg %p176
      %p183 = scmp.eq.s32.totalorder %s15, 1
      %p184 = por %p182, %p183
      %p185 = scmp.ne.s32.totalorder %s177, %s180
      %p186 = scmp.eq.s32.totalorder %s15, 0
      %p187 = por %p185, %p186
      %p188 = scmp.ne.s32.totalorder %s177, %s180
      %p189 = scmp.eq.s32.totalorder %s20, 1
      %p190 = por %p188, %p189
      %p191 = scmp.ne.s32.totalorder %s180, %s181
      %p192 = scmp.eq.s32.totalorder %s20, 0
      %p193 = por %p191, %p192
      %p194 = scmp.ne.s32.totalorder %s180, %s181
      %p195 = scmp.eq.s32.totalorder %s21, 1
      %p196 = por %p194, %p195
      %p198 = scmp.ne.s32.totalorder %s181, %s197
      %p199 = scmp.eq.s32.totalorder %s21, 0
      %p200 = por %p198, %p199
      %p201 = scmp.le.s32.totalorder 1, %s15
      %p202 = scmp.lt.s32.totalorder %s15, 3
      %p203 = pnand %p201, %p202
      %p204 = pneg %p203
      // Predicated region
      $region9: #{neural_net_forward.1} parent=5 // pred_check
        _
      $region10: #{neural_net_forward.1} parent=5 // pred_check_branch
        %206 = sbr.rel (%p203) target = $region12
      $region11: #{neural_net_forward.1} parent=5 // pred_region
        %s207 = ssub.s32 %s15, 1
        // Predicated region
        $region13: #{neural_net_forward.1} parent=11 // pred_check
          %p208 = pneg %p62
        $region14: #{neural_net_forward.1} parent=11 // pred_check_branch
          %210 = sbr.rel (%p208) target = $region16
        $region15: #{neural_net_forward.1} parent=11 // pred_region
          _
        $region16: #{neural_net_forward.1} parent=11 // pred_fallthru
          _
        // Predicated region
        $region17: #{neural_net_forward.1} parent=11 // pred_check
          %p211 = pneg %p83
        $region18: #{neural_net_forward.1} parent=11 // pred_check_branch
          %213 = sbr.rel (%p211) target = $region20
        $region19: #{neural_net_forward.1} parent=11 // pred_region
          _
        $region20: #{neural_net_forward.1} parent=11 // pred_fallthru
          _
        // Predicated region
        $region21: #{neural_net_forward.1} parent=11 // pred_check
          %p214 = pneg %p104
        $region22: #{neural_net_forward.1} parent=11 // pred_check_branch
          %216 = sbr.rel (%p214) target = $region24
        $region23: #{neural_net_forward.1} parent=11 // pred_region
          %218 = vsyncadd [#allocation3], 0
          %s219 = sshll.u32 %s3, 4
          %s220 = int_to_ptr.hbm [resolvable:$true] %s219
          %s221 = sshll.u32 [#allocation2], 4
          %s222 = int_to_ptr.vmem [resolvable:$true] %s221
          %227 = dma.hbm_to_vmem [thread:$0]  %s220, 1024, %s222, [#allocation3], 64, 64, 4
        $region24: #{neural_net_forward.1} parent=11 // pred_fallthru
          _
        // Predicated region
        $region25: #{neural_net_forward.1} parent=11 // pred_check
          %p228 = pneg %p125
        $region26: #{neural_net_forward.1} parent=11 // pred_check_branch
          %230 = sbr.rel (%p228) target = $region28
        $region27: #{neural_net_forward.1} parent=11 // pred_region
          _
        $region28: #{neural_net_forward.1} parent=11 // pred_fallthru
          _
        // Predicated region
        $region29: #{neural_net_forward.1} parent=11 // pred_check
          %p231 = pneg %p146
        $region30: #{neural_net_forward.1} parent=11 // pred_check_branch
          %233 = sbr.rel (%p231) target = $region32
        $region31: #{neural_net_forward.1} parent=11 // pred_region
          %235 = vsyncadd [#allocation5], 0
          %s236 = sshll.u32 %s5, 4
          %s237 = int_to_ptr.hbm [resolvable:$true] %s236
          %s238 = sshll.u32 [#allocation4], 4
          %s239 = int_to_ptr.vmem [resolvable:$true] %s238
          %244 = dma.hbm_to_vmem [thread:$0]  %s237, 1024, %s239, [#allocation5], 64, 64, 4
        $region32: #{neural_net_forward.1} parent=11 // pred_fallthru
          _
        // Predicated region
        $region33: #{neural_net_forward.1} parent=11 // pred_check
          %p245 = pneg %p167
        $region34: #{neural_net_forward.1} parent=11 // pred_check_branch
          %247 = sbr.rel (%p245) target = $region36
        $region35: #{neural_net_forward.1} parent=11 // pred_region
          _
        $region36: #{neural_net_forward.1} parent=11 // pred_fallthru
          _
      $region12: #{neural_net_forward.1} parent=5 // pred_fallthru
        _
      %p248 = scmp.lt.s32.totalorder %s15, 2
      // Predicated region
      $region37: #{neural_net_forward.1} parent=5 // pred_check
        %p249 = pneg %p248
      $region38: #{neural_net_forward.1} parent=5 // pred_check_branch
        %251 = sbr.rel (%p249) target = $region40
      $region39: #{neural_net_forward.1} parent=5 // pred_region
        // Predicated region
        $region41: #{neural_net_forward.1} parent=39 // pred_check
          %p252 = pneg %p35
        $region42: #{neural_net_forward.1} parent=39 // pred_check_branch
          %254 = sbr.rel (%p252) target = $region44
        $region43: #{neural_net_forward.1} parent=39 // pred_region
          %p255 = scmp.lt.s32.totalorder %s15, 1
          %s256 = scalar_select %p255, %s15, 1
          %s257 = smul.addr %s256, 8
          %s258 = scalar_lea.vmem %s0, %s257
        $region44: #{neural_net_forward.1} parent=39 // pred_fallthru
          _
      $region40: #{neural_net_forward.1} parent=5 // pred_fallthru
        _
      %p259 = scmp.le.s32.totalorder 1, %s15
      %p260 = scmp.lt.s32.totalorder %s15, 3
      %p261 = pnand %p259, %p260
      %p262 = pneg %p261
      // Predicated region
      $region45: #{neural_net_forward.1} parent=5 // pred_check
        _
      $region46: #{neural_net_forward.1} parent=5 // pred_check_branch
        %264 = sbr.rel (%p261) target = $region48
      $region47: #{neural_net_forward.1} parent=5 // pred_region
        %s265 = ssub.s32 %s15, 1
        // Predicated region
        $region49: #{neural_net_forward.1} parent=47 // pred_check
          %p266 = pneg %p104
        $region50: #{neural_net_forward.1} parent=47 // pred_check_branch
          %268 = sbr.rel (%p266) target = $region52
        $region51: #{neural_net_forward.1} parent=47 // pred_region
          %270 = dma.done [#allocation3], 1024
        $region52: #{neural_net_forward.1} parent=47 // pred_fallthru
          _
        // Predicated region
        $region53: #{neural_net_forward.1} parent=47 // pred_check
          %p271 = pneg %p146
        $region54: #{neural_net_forward.1} parent=47 // pred_check_branch
          %273 = sbr.rel (%p271) target = $region56
        $region55: #{neural_net_forward.1} parent=47 // pred_region
          %275 = dma.done [#allocation5], 1024
        $region56: #{neural_net_forward.1} parent=47 // pred_fallthru
          _
        %p276 = scmp.lt.s32.totalorder %s20, 1
        %s277 = scalar_select %p276, %s20, 1
        %s278 = smul.addr %s277, 8
        %s279 = scalar_lea.vmem %s0, %s278
        %p280 = pneg %p41
        %p281 = pneg %p38
        %p282 = pneg %p62
        %p283 = pneg %p59
        %p284 = pneg %p83
        %p285 = pneg %p80
        %p286 = pneg %p104
        %p287 = pneg %p101
        %p288 = pneg %p125
        %p289 = pneg %p122
        %p290 = pneg %p146
        %p291 = pneg %p143
        %p292 = pneg %p167
        %p293 = pneg %p164
        %p294 = pneg %p193
        %p295 = pneg %p190
        %p296 = scmp.lt.s32.totalorder %s20, 1
        %s297 = scalar_select %p296, %s20, 1
        %s298 = smul.addr %s297, 8
        %s299 = scalar_lea.vmem %s7, %s298
        %p300 = scmp.lt.s32.totalorder %s20, 1
        %s301 = scalar_select %p300, %s20, 1
        %s302 = smul.addr %s301, 8
        %s303 = scalar_lea.vmem %s0, %s302
        %p304 = scmp.lt.s32.totalorder %s20, 1
        %s305 = scalar_select %p304, %s20, 1
        %s306 = smul.addr %s305, 8
        %s307 = scalar_lea.vmem %s7, %s306
        %v309 = vld [vmem:[%s303] sm:$0xff]
        %v310 = vpack.c.bf16 %v309, %v309
        %v311 = vld [vmem:[%s1] sm:$0xf]
        %v312 = vld [vmem:[%s1 + $0x4] sm:$0xf]
        %v313 = vld [vmem:[%s1 + $0x8] sm:$0xf]
        %v314 = vld [vmem:[%s1 + $0xc] sm:$0xf]
        %v315 = vld [vmem:[%s2] sm:$0x1]
        %v317 = vperm.slane %v315, 0
        %v323 = vunpack.c.l.b16 %v311
        %v324 = vunpack.c.l.b16 %v312
        %v325 = vunpack.c.l.b16 %v313
        %v326 = vunpack.c.l.b16 %v314
        %v327 = vpack.c.b16 %v324, %v323
        %v328 = vpack.c.b16 %v326, %v325
        %vm331 = vcmask 261120
        %v333 = vsel %vm331, %v310, 0
        %335 = vmatpush.bf16.msra.mxu0 0
        %336 = vmatpush.bf16.msra.mxu0 0
        %337 = vmatpush.bf16.msra.mxu0 0
        %338 = vmatpush.bf16.msra.mxu0 0
        %339 = vmatpush.bf16.msra.mxu0 0
        %340 = vmatpush.bf16.msra.mxu0 0
        %341 = vmatpush.bf16.msra.mxu0 %v328
        %342 = vmatpush.bf16.msra.mxu0 %v327
        %343 = vmatmul.bf16.gmra.mxu0 %v333
        %v344 = vpop.f32.mrf.mxu0
        %v345 = vadd.f32 %v317, %v344
        %v346 = vpop.f32.mrf.mxu0
        %347 = vdwg.mxu0
        %v348 = vmax.f32 %v345, 0.0
        %v349 = vpack.c.bf16 %v348, %v348
        %v350 = vld [vmem:[#allocation2] sm:$0xf]
        %v351 = vld [vmem:[#allocation2 + $0x4] sm:$0xf]
        %v352 = vld [vmem:[#allocation2 + $0x8] sm:$0xf]
        %v353 = vld [vmem:[#allocation2 + $0xc] sm:$0xf]
        %v354 = vld [vmem:[#allocation2 + $0x10] sm:$0xf]
        %v355 = vld [vmem:[#allocation2 + $0x14] sm:$0xf]
        %v356 = vld [vmem:[#allocation2 + $0x18] sm:$0xf]
        %v357 = vld [vmem:[#allocation2 + $0x1c] sm:$0xf]
        %v358 = vld [vmem:[#allocation2 + $0x20] sm:$0xf]
        %v359 = vld [vmem:[#allocation2 + $0x24] sm:$0xf]
        %v360 = vld [vmem:[#allocation2 + $0x28] sm:$0xf]
        %v361 = vld [vmem:[#allocation2 + $0x2c] sm:$0xf]
        %v362 = vld [vmem:[#allocation2 + $0x30] sm:$0xf]
        %v363 = vld [vmem:[#allocation2 + $0x34] sm:$0xf]
        %v364 = vld [vmem:[#allocation2 + $0x38] sm:$0xf]
        %v365 = vld [vmem:[#allocation2 + $0x3c] sm:$0xf]
        %v366 = vld [vmem:[%s4] sm:$0x1]
        %v368 = vperm.slane %v366, 0
        %v386 = vunpack.c.l.b16 %v350
        %v387 = vunpack.c.l.b16 %v351
        %v388 = vunpack.c.l.b16 %v352
        %v389 = vunpack.c.l.b16 %v353
        %v390 = vunpack.c.l.b16 %v354
        %v391 = vunpack.c.l.b16 %v355
        %v392 = vunpack.c.l.b16 %v356
        %v393 = vunpack.c.l.b16 %v357
        %v394 = vunpack.c.l.b16 %v358
        %v395 = vunpack.c.l.b16 %v359
        %v396 = vunpack.c.l.b16 %v360
        %v397 = vunpack.c.l.b16 %v361
        %v398 = vunpack.c.l.b16 %v362
        %v399 = vunpack.c.l.b16 %v363
        %v400 = vunpack.c.l.b16 %v364
        %v401 = vunpack.c.l.b16 %v365
        %v402 = vpack.c.b16 %v387, %v386
        %v403 = vpack.c.b16 %v389, %v388
        %v404 = vpack.c.b16 %v391, %v390
        %v405 = vpack.c.b16 %v393, %v392
        %v406 = vpack.c.b16 %v395, %v394
        %v407 = vpack.c.b16 %v397, %v396
        %v408 = vpack.c.b16 %v399, %v398
        %v409 = vpack.c.b16 %v401, %v400
        %418 = vmatpush.bf16.msra.mxu0 %v409
        %419 = vmatpush.bf16.msra.mxu0 %v408
        %420 = vmatpush.bf16.msra.mxu0 %v407
        %421 = vmatpush.bf16.msra.mxu0 %v406
        %422 = vmatpush.bf16.msra.mxu0 %v405
        %423 = vmatpush.bf16.msra.mxu0 %v404
        %424 = vmatpush.bf16.msra.mxu0 %v403
        %425 = vmatpush.bf16.msra.mxu0 %v402
        %426 = vmatmul.bf16.gmra.mxu0 %v349
        %v427 = vpop.f32.mrf.mxu0
        %v428 = vadd.f32 %v368, %v427
        %v429 = vpop.f32.mrf.mxu0
        %430 = vdwg.mxu0
        %v431 = vmax.f32 %v428, 0.0
        %v432 = vpack.c.bf16 %v431, %v431
        %v433 = vld [vmem:[#allocation4] sm:$0xf]
        %v434 = vld [vmem:[#allocation4 + $0x4] sm:$0xf]
        %v435 = vld [vmem:[#allocation4 + $0x8] sm:$0xf]
        %v436 = vld [vmem:[#allocation4 + $0xc] sm:$0xf]
        %v437 = vld [vmem:[#allocation4 + $0x10] sm:$0xf]
        %v438 = vld [vmem:[#allocation4 + $0x14] sm:$0xf]
        %v439 = vld [vmem:[#allocation4 + $0x18] sm:$0xf]
        %v440 = vld [vmem:[#allocation4 + $0x1c] sm:$0xf]
        %v441 = vld [vmem:[#allocation4 + $0x20] sm:$0xf]
        %v442 = vld [vmem:[#allocation4 + $0x24] sm:$0xf]
        %v443 = vld [vmem:[#allocation4 + $0x28] sm:$0xf]
        %v444 = vld [vmem:[#allocation4 + $0x2c] sm:$0xf]
        %v445 = vld [vmem:[#allocation4 + $0x30] sm:$0xf]
        %v446 = vld [vmem:[#allocation4 + $0x34] sm:$0xf]
        %v447 = vld [vmem:[#allocation4 + $0x38] sm:$0xf]
        %v448 = vld [vmem:[#allocation4 + $0x3c] sm:$0xf]
        %v449 = vld [vmem:[%s6] sm:$0x1]
        %v451 = vperm.slane %v449, 0
        %v469 = vunpack.c.l.b16 %v433
        %v470 = vunpack.c.l.b16 %v434
        %v471 = vunpack.c.l.b16 %v435
        %v472 = vunpack.c.l.b16 %v436
        %v473 = vunpack.c.l.b16 %v437
        %v474 = vunpack.c.l.b16 %v438
        %v475 = vunpack.c.l.b16 %v439
        %v476 = vunpack.c.l.b16 %v440
        %v477 = vunpack.c.l.b16 %v441
        %v478 = vunpack.c.l.b16 %v442
        %v479 = vunpack.c.l.b16 %v443
        %v480 = vunpack.c.l.b16 %v444
        %v481 = vunpack.c.l.b16 %v445
        %v482 = vunpack.c.l.b16 %v446
        %v483 = vunpack.c.l.b16 %v447
        %v484 = vunpack.c.l.b16 %v448
        %v485 = vpack.c.b16 %v470, %v469
        %v486 = vpack.c.b16 %v472, %v471
        %v487 = vpack.c.b16 %v474, %v473
        %v488 = vpack.c.b16 %v476, %v475
        %v489 = vpack.c.b16 %v478, %v477
        %v490 = vpack.c.b16 %v480, %v479
        %v491 = vpack.c.b16 %v482, %v481
        %v492 = vpack.c.b16 %v484, %v483
        %501 = vmatpush.bf16.msra.mxu0 %v492
        %502 = vmatpush.bf16.msra.mxu0 %v491
        %503 = vmatpush.bf16.msra.mxu0 %v490
        %504 = vmatpush.bf16.msra.mxu0 %v489
        %505 = vmatpush.bf16.msra.mxu0 %v488
        %506 = vmatpush.bf16.msra.mxu0 %v487
        %507 = vmatpush.bf16.msra.mxu0 %v486
        %508 = vmatpush.bf16.msra.mxu0 %v485
        %509 = vmatmul.bf16.gmra.mxu0 %v432
        %v510 = vpop.f32.mrf.mxu0
        %v511 = vadd.f32 %v451, %v510
        %v512 = vpop.f32.mrf.mxu0
        %513 = vdwg.mxu0
        %514 = vst [vmem:[%s307] sm:$0xff] %v511
        %p515 = scmp.lt.s32.totalorder %s20, 1
        %s516 = scalar_select %p515, %s20, 1
        %s517 = smul.addr %s516, 8
        %s518 = scalar_lea.vmem %s7, %s517
        // Predicated region
        $region57: #{neural_net_forward.1} parent=47 // pred_check
          %p519 = pneg %p190
        $region58: #{neural_net_forward.1} parent=47 // pred_check_branch
          %521 = sbr.rel (%p519) target = $region60
        $region59: #{neural_net_forward.1} parent=47 // pred_region
          _
        $region60: #{neural_net_forward.1} parent=47 // pred_fallthru
          _
      $region48: #{neural_net_forward.1} parent=5 // pred_fallthru
        _
      %p522 = scmp.le.s32.totalorder 2, %s15
      // Predicated region
      $region61: #{neural_net_forward.1} parent=5 // pred_check
        %p523 = pneg %p522
      $region62: #{neural_net_forward.1} parent=5 // pred_check_branch
        %525 = sbr.rel (%p523) target = $region64
      $region63: #{neural_net_forward.1} parent=5 // pred_region
        %s526 = ssub.s32 %s15, 2
        // Predicated region
        $region65: #{neural_net_forward.1} parent=63 // pred_check
          %p527 = pneg %p196
        $region66: #{neural_net_forward.1} parent=63 // pred_check_branch
          %529 = sbr.rel (%p527) target = $region68
        $region67: #{neural_net_forward.1} parent=63 // pred_region
          %p530 = scmp.lt.s32.totalorder %s21, 1
          %s531 = scalar_select %p530, %s21, 1
          %s532 = smul.addr %s531, 8
          %s533 = scalar_lea.vmem %s7, %s532
        $region68: #{neural_net_forward.1} parent=63 // pred_fallthru
          _
      $region64: #{neural_net_forward.1} parent=5 // pred_fallthru
        _
    $region6: #{neural_net_forward.1} parent=1 // loop_footer
      %s19 = sadd.s32 1, %s15
    $region7: #{neural_net_forward.1} parent=1 // loop_footer_branch
      %14 = sbr.rel target = $region3
    $region8: #{neural_net_forward.1} parent=1 // loop_exit
      _
    %534 = vsyncpa [#allocation3], 1
    %s535 = scalar_lea.sflag [#allocation3], 1
    %536 = vsyncpa %s535, 1
    %537 = vsyncpa [#allocation5], 1

</llo_original>
